<compile_context>
chip_gen: v5e
topology: v5e:2x2
jax: 0.10.0
libtpu: 0.0.40
codegen_flags: <defaults>
</compile_context>

<pallas_src>
import jax
import jax.numpy as jnp
from jax.experimental import pallas as pl
from jax.experimental.pallas import tpu as pltpu


# ---------------- model dimensions (TokenizerConfig, synthetic) -------------
OBS_DIM = 32       # observation feature dim
NUM_ACTIONS = 4    # discrete action space size
ACT_EMB = 16       # action embedding dim
HIDDEN = 64        # MLP hidden dim
LATENT = 32        # continuous latent dim
CODEBOOK = 128     # number of VQ codes
COMMIT_BETA = 0.25 # commitment loss weight


def _make_kernel(n_valid):
    """Fused encode -> quantize -> decode (+ loss partial sums) per row tile."""

    def kernel(obs_ref, act_ref,
               atab_ref,
               w1o_ref, w1a_ref, b1_ref, w2_ref, b2_ref,
               cb_ref, cbt_ref, csq_ref,
               w3z_ref, w3a_ref, b3_ref, w4_ref, b4_ref,
               recon_ref, z_ref, zq_ref, tok_ref, loss_ref):
        tm = obs_ref.shape[0]

        obs = obs_ref[...]                                  # [TM, 32] f32
        aid = act_ref[...]                                  # [TM, 1]  int32

        # ---- in-kernel action-embedding gather (exact select-accumulate,
        #      VPU only; avoids materializing aemb [N,16] in HBM) ----
        atab = atab_ref[...]                                # [4, 16] f32
        aemb = jnp.zeros((tm, ACT_EMB), jnp.float32)
        for a in range(NUM_ACTIONS):
            aemb = aemb + (aid == a).astype(jnp.float32) * atab[a:a + 1, :]
        aemb_bf = aemb.astype(jnp.bfloat16)

        # ---- encoder MLP: split W1 (obs half + act half), bf16 operands ----
        h = jnp.dot(obs.astype(jnp.bfloat16), w1o_ref[...],
                    preferred_element_type=jnp.float32)
        h = h + jnp.dot(aemb_bf, w1a_ref[...],
                        preferred_element_type=jnp.float32)
        h = jnp.maximum(h + b1_ref[...], 0.0)
        z = jnp.dot(h.astype(jnp.bfloat16), w2_ref[...],
                    preferred_element_type=jnp.float32) + b2_ref[...]   # [TM, L]

        # ---- VQ quantize: nearest code (per-row |z|^2 dropped, argmin-
        #      invariant). bf16 distance matmul may flip near-ties (benign). ----
        dists = csq_ref[...] - 2.0 * jnp.dot(
            z.astype(jnp.bfloat16), cbt_ref[...],
            preferred_element_type=jnp.float32)                          # [TM, K]
        lane = jax.lax.broadcasted_iota(jnp.int32, dists.shape, 1)
        min_d = jnp.min(dists, axis=-1, keepdims=True)
        tok = jnp.min(jnp.where(dists <= min_d, lane, CODEBOOK),
                      axis=-1, keepdims=True)                 # [TM,1] first argmin
        onehot = (lane == tok).astype(jnp.bfloat16)                      # [TM, K]
        zq = jnp.dot(onehot, cb_ref[...],
                     preferred_element_type=jnp.float32)                 # [TM, L]

        # ---- decoder MLP: split first layer reuses resident aemb ----
        h2 = jnp.dot(zq.astype(jnp.bfloat16), w3z_ref[...],
                     preferred_element_type=jnp.float32)
        h2 = h2 + jnp.dot(aemb_bf, w3a_ref[...],
                          preferred_element_type=jnp.float32)
        h2 = jnp.maximum(h2 + b3_ref[...], 0.0)
        recon = jnp.dot(h2.astype(jnp.bfloat16), w4_ref[...],
                        preferred_element_type=jnp.float32) + b4_ref[...]

        # ---- direct per-output stores (no in-kernel concat) ----
        recon_ref[...] = recon
        z_ref[...] = z
        zq_ref[...] = zq
        tok_ref[...] = tok

        # ---- fused loss partial sums (padded rows masked out) ----
        row = (jax.lax.broadcasted_iota(jnp.int32, (tm, 1), 0)
               + pl.program_id(0) * tm)
        valid = (row < n_valid).astype(jnp.float32)           # [TM, 1]
        d_rec = recon - obs
        d_lat = z - zq
        s_rec = jnp.sum(valid * d_rec * d_rec, axis=0, keepdims=True)
        s_rec = jnp.sum(s_rec, axis=1, keepdims=True)         # (1, 1)
        s_lat = jnp.sum(valid * d_lat * d_lat, axis=0, keepdims=True)
        s_lat = jnp.sum(s_lat, axis=1, keepdims=True)         # (1, 1)
        r8 = jax.lax.broadcasted_iota(jnp.int32, (8, 128), 0)
        c8 = jax.lax.broadcasted_iota(jnp.int32, (8, 128), 1)
        zero = jnp.zeros((8, 128), jnp.float32)
        loss_ref[...] = jnp.where((r8 == 0) & (c8 == 0), s_rec,
                                  jnp.where((r8 == 0) & (c8 == 1), s_lat, zero))

    return kernel


def init_params(key):
    ks = jax.random.split(key, 7)

    def w(k, shape, fan_in):
        return (jax.random.normal(k, shape, jnp.float32) /
                jnp.sqrt(fan_in)).astype(jnp.float32)

    return {
        "act_table": w(ks[0], (NUM_ACTIONS, ACT_EMB), 1.0),
        "w1": w(ks[1], (OBS_DIM + ACT_EMB, HIDDEN), OBS_DIM + ACT_EMB),
        "b1": jnp.zeros((1, HIDDEN), jnp.float32),
        "w2": w(ks[2], (HIDDEN, LATENT), HIDDEN),
        "b2": jnp.zeros((1, LATENT), jnp.float32),
        "codebook": w(ks[3], (CODEBOOK, LATENT), 1.0),
        "w3": w(ks[4], (LATENT + ACT_EMB, HIDDEN), LATENT + ACT_EMB),
        "b3": jnp.zeros((1, HIDDEN), jnp.float32),
        "w4": w(ks[5], (HIDDEN, OBS_DIM), HIDDEN),
        "b4": jnp.zeros((1, OBS_DIM), jnp.float32),
    }


def _row_tile(n):
    """Row-tile size: big tiles amortize ~0.35us/step grid overhead, but keep
    >=2 tiles for mid-size N so v7x's two TensorCores both get work."""
    n8 = ((max(n, 1) + 7) // 8) * 8
    if n8 <= 256:
        return n8                             # tiny: single tile
    if n8 <= 4096:
        return ((n8 // 2) + 7) // 8 * 8       # mid: >=2 tiles
    return 2048                               # large: ~a few MiB VMEM footprint


@jax.jit
def tokenizer_forward(params, obs, actions):
    """obs: [B, S, OBS_DIM] f32, actions: [B, S] int -> dict of outputs."""
    B, S, D = obs.shape
    assert D == OBS_DIM
    N = B * S

    obs2d = obs.reshape(N, OBS_DIM).astype(jnp.float32)
    act2d = actions.reshape(N, 1).astype(jnp.int32)

    TM = _row_tile(N)
    n_pad = pl.cdiv(N, TM) * TM
    if n_pad != N:
        obs2d = jnp.pad(obs2d, ((0, n_pad - N), (0, 0)))
        act2d = jnp.pad(act2d, ((0, n_pad - N), (0, 0)))
    num_tiles = n_pad // TM

    # bf16 MXU operands prepared once, wrapper-side (act_table stays f32:
    # the in-kernel select-gather is exact).
    bf = lambda a: a.astype(jnp.bfloat16)
    cb = params["codebook"]
    weights = [
        params["act_table"],                       # [4, 16]  f32
        bf(params["w1"][:OBS_DIM]),                # [32, 64] bf16 (obs half)
        bf(params["w1"][OBS_DIM:]),                # [16, 64] bf16 (act half)
        params["b1"],                              # [1, 64]  f32
        bf(params["w2"]), params["b2"],            # [64, 32] bf16 / [1, 32] f32
        bf(cb), bf(cb.T),                          # [K, L] / [L, K] bf16
        jnp.sum(cb * cb, axis=-1)[None, :],        # [1, K]   f32 squared norms
        bf(params["w3"][:LATENT]),                 # [32, 64] bf16 (zq half)
        bf(params["w3"][LATENT:]),                 # [16, 64] bf16 (act half)
        params["b3"],                              # [1, 64]  f32
        bf(params["w4"]), params["b4"],            # [64, 32] bf16 / [1, 32] f32
    ]

    def const_spec(a):
        zeros = (0,) * a.ndim
        return pl.BlockSpec(a.shape, lambda i, _z=zeros: _z)

    out_shapes = (
        jax.ShapeDtypeStruct((n_pad, OBS_DIM), jnp.float32),      # recon
        jax.ShapeDtypeStruct((n_pad, LATENT), jnp.float32),       # z
        jax.ShapeDtypeStruct((n_pad, LATENT), jnp.float32),       # zq
        jax.ShapeDtypeStruct((n_pad, 1), jnp.int32),              # tokens
        jax.ShapeDtypeStruct((num_tiles * 8, 128), jnp.float32),  # loss partials
    )
    out_specs = [
        pl.BlockSpec((TM, OBS_DIM), lambda i: (i, 0)),
        pl.BlockSpec((TM, LATENT), lambda i: (i, 0)),
        pl.BlockSpec((TM, LATENT), lambda i: (i, 0)),
        pl.BlockSpec((TM, 1), lambda i: (i, 0)),
        pl.BlockSpec((8, 128), lambda i: (i, 0)),
    ]

    recon_p, z_p, zq_p, tok_p, loss_p = pl.pallas_call(
        _make_kernel(N),
        out_shape=out_shapes,
        grid_spec=pltpu.PrefetchScalarGridSpec(
            num_scalar_prefetch=0,
            grid=(num_tiles,),
            in_specs=[pl.BlockSpec((TM, OBS_DIM), lambda i: (i, 0)),
                      pl.BlockSpec((TM, 1), lambda i: (i, 0))]
                     + [const_spec(a) for a in weights],
            out_specs=out_specs,
        ),
        compiler_params=pltpu.CompilerParams(
            dimension_semantics=("parallel",),
            vmem_limit_bytes=32 * 1024 * 1024,
        ),
    )(obs2d, act2d, *weights)

    recon = recon_p[:N].reshape(B, S, OBS_DIM)
    z = z_p[:N].reshape(B, S, LATENT)
    zq = zq_p[:N].reshape(B, S, LATENT)
    tokens = tok_p[:N, 0].reshape(B, S)

    # straight-through estimator (forward value == zq)
    # TODO(synk): pl.pallas_call has no autodiff rule; add a custom_vjp if
    # gradients through the tokenizer are needed (this path is forward-only).
    zq_st = z + jax.lax.stop_gradient(zq - z)

    # reduce the per-tile partial sums produced in-kernel (tiny)
    totals = loss_p.reshape(num_tiles, 8, 128).sum(axis=0)
    recon_loss = totals[0, 0] / (N * OBS_DIM)
    lat_mse = totals[0, 1] / (N * LATENT)
    commitment_loss = lat_mse   # forward value of mean((z - sg(zq))^2)
    codebook_loss = lat_mse     # forward value of mean((sg(z) - zq)^2)
    total_loss = recon_loss + codebook_loss + COMMIT_BETA * commitment_loss

    return {
        "reconstructed_obs": recon,
        "tokens": tokens,
        "latents": z,
        "quantized_latents": zq_st,
        "reconstruction_loss": recon_loss,
        "commitment_loss": commitment_loss,
        "codebook_loss": codebook_loss,
        "total_loss": total_loss,
    }


if __name__ == "__main__":
    key = jax.random.PRNGKey(0)
    kp, ko, ka = jax.random.split(key, 3)

    params = init_params(kp)

    B, S = 2, 8
    obs = jax.random.normal(ko, (B, S, OBS_DIM), jnp.float32)
    actions = jax.random.randint(ka, (B, S), 0, NUM_ACTIONS, jnp.int32)

    out = tokenizer_forward(params, obs, actions)
    jax.block_until_ready(out)

    assert out["reconstructed_obs"].shape == (B, S, OBS_DIM)
    assert out["tokens"].shape == (B, S)
    assert out["tokens"].dtype == jnp.int32
    assert jnp.all(out["tokens"] >= 0) and jnp.all(out["tokens"] < CODEBOOK)
    assert out["quantized_latents"].shape == (B, S, LATENT)
    assert out["latents"].shape == (B, S, LATENT)
    assert jnp.isfinite(out["total_loss"])
    assert jnp.isfinite(out["reconstruction_loss"])

    print("KERNEL_OK")
</pallas_src>

<mosaic_0001>
module attributes {stable_mosaic.version = 11 : i64} {
  func.func @kernel(%arg0: i32, %arg1: memref<16x32xf32, #tpu.memory_space<vmem>>, %arg2: memref<16x1xi32, #tpu.memory_space<vmem>>, %arg3: memref<4x16xf32, #tpu.memory_space<vmem>>, %arg4: memref<32x64xbf16, #tpu.memory_space<vmem>>, %arg5: memref<16x64xbf16, #tpu.memory_space<vmem>>, %arg6: memref<1x64xf32, #tpu.memory_space<vmem>>, %arg7: memref<64x32xbf16, #tpu.memory_space<vmem>>, %arg8: memref<1x32xf32, #tpu.memory_space<vmem>>, %arg9: memref<128x32xbf16, #tpu.memory_space<vmem>>, %arg10: memref<32x128xbf16, #tpu.memory_space<vmem>>, %arg11: memref<1x128xf32, #tpu.memory_space<vmem>>, %arg12: memref<32x64xbf16, #tpu.memory_space<vmem>>, %arg13: memref<16x64xbf16, #tpu.memory_space<vmem>>, %arg14: memref<1x64xf32, #tpu.memory_space<vmem>>, %arg15: memref<64x32xbf16, #tpu.memory_space<vmem>>, %arg16: memref<1x32xf32, #tpu.memory_space<vmem>>, %arg17: memref<16x32xf32, #tpu.memory_space<vmem>>, %arg18: memref<16x32xf32, #tpu.memory_space<vmem>>, %arg19: memref<16x32xf32, #tpu.memory_space<vmem>>, %arg20: memref<16x1xi32, #tpu.memory_space<vmem>>, %arg21: memref<8x128xf32, #tpu.memory_space<vmem>>) attributes {dimension_semantics = [#tpu.dimension_semantics<parallel>], iteration_bounds = array<i64: 1>, scalar_prefetch = 0 : i64, scratch_operands = 0 : i64, tpu.core_type = #tpu.core_type<tc>, window_params = [{transform_indices = @transform_0, window_bounds = array<i64: 16, 32>}, {transform_indices = @transform_1, window_bounds = array<i64: 16, 1>}, {pipeline_mode = #tpu.pipeline_mode<synchronous>, transform_indices = @transform_2, window_bounds = array<i64: 4, 16>}, {pipeline_mode = #tpu.pipeline_mode<synchronous>, transform_indices = @transform_3, window_bounds = array<i64: 32, 64>}, {pipeline_mode = #tpu.pipeline_mode<synchronous>, transform_indices = @transform_4, window_bounds = array<i64: 16, 64>}, {pipeline_mode = #tpu.pipeline_mode<synchronous>, transform_indices = @transform_5, window_bounds = array<i64: 1, 64>}, {pipeline_mode = #tpu.pipeline_mode<synchronous>, transform_indices = @transform_6, window_bounds = array<i64: 64, 32>}, {pipeline_mode = #tpu.pipeline_mode<synchronous>, transform_indices = @transform_7, window_bounds = array<i64: 1, 32>}, {pipeline_mode = #tpu.pipeline_mode<synchronous>, transform_indices = @transform_8, window_bounds = array<i64: 128, 32>}, {pipeline_mode = #tpu.pipeline_mode<synchronous>, transform_indices = @transform_9, window_bounds = array<i64: 32, 128>}, {pipeline_mode = #tpu.pipeline_mode<synchronous>, transform_indices = @transform_10, window_bounds = array<i64: 1, 128>}, {pipeline_mode = #tpu.pipeline_mode<synchronous>, transform_indices = @transform_11, window_bounds = array<i64: 32, 64>}, {pipeline_mode = #tpu.pipeline_mode<synchronous>, transform_indices = @transform_12, window_bounds = array<i64: 16, 64>}, {pipeline_mode = #tpu.pipeline_mode<synchronous>, transform_indices = @transform_13, window_bounds = array<i64: 1, 64>}, {pipeline_mode = #tpu.pipeline_mode<synchronous>, transform_indices = @transform_14, window_bounds = array<i64: 64, 32>}, {pipeline_mode = #tpu.pipeline_mode<synchronous>, transform_indices = @transform_15, window_bounds = array<i64: 1, 32>}, {transform_indices = @transform_16, window_bounds = array<i64: 16, 32>}, {transform_indices = @transform_17, window_bounds = array<i64: 16, 32>}, {transform_indices = @transform_18, window_bounds = array<i64: 16, 32>}, {transform_indices = @transform_19, window_bounds = array<i64: 16, 1>}, {transform_indices = @transform_20, window_bounds = array<i64: 8, 128>}]} {
    %c0 = arith.constant 0 : index
    %c0_0 = arith.constant 0 : index
    %0 = vector.load %arg1[%c0, %c0_0] : memref<16x32xf32, #tpu.memory_space<vmem>>, vector<16x32xf32>
    %c0_1 = arith.constant 0 : index
    %c0_2 = arith.constant 0 : index
    %1 = vector.load %arg2[%c0_1, %c0_2] : memref<16x1xi32, #tpu.memory_space<vmem>>, vector<16x1xi32>
    %c0_3 = arith.constant 0 : index
    %c0_4 = arith.constant 0 : index
    %2 = vector.load %arg3[%c0_3, %c0_4] : memref<4x16xf32, #tpu.memory_space<vmem>>, vector<4x16xf32>
    %cst = arith.constant 0.000000e+00 : f32
    %3 = vector.broadcast %cst : f32 to vector<16x16xf32>
    %c0_i32 = arith.constant 0 : i32
    %4 = vector.broadcast %c0_i32 : i32 to vector<16x1xi32>
    %5 = arith.cmpi eq, %1, %4 : vector<16x1xi32>
    %6 = arith.extui %5 : vector<16x1xi1> to vector<16x1xi32>
    %7 = arith.sitofp %6 : vector<16x1xi32> to vector<16x1xf32>
    %8 = vector.extract_strided_slice %2 {offsets = [0, 0], sizes = [1, 16], strides = [1, 1]} : vector<4x16xf32> to vector<1x16xf32>
    %9 = vector.broadcast %7 : vector<16x1xf32> to vector<16x16xf32>
    %10 = vector.broadcast %8 : vector<1x16xf32> to vector<16x16xf32>
    %11 = arith.mulf %9, %10 : vector<16x16xf32>
    %12 = arith.addf %3, %11 : vector<16x16xf32>
    %c1_i32 = arith.constant 1 : i32
    %13 = vector.broadcast %c1_i32 : i32 to vector<16x1xi32>
    %14 = arith.cmpi eq, %1, %13 : vector<16x1xi32>
    %15 = arith.extui %14 : vector<16x1xi1> to vector<16x1xi32>
    %16 = arith.sitofp %15 : vector<16x1xi32> to vector<16x1xf32>
    %17 = vector.extract_strided_slice %2 {offsets = [1, 0], sizes = [1, 16], strides = [1, 1]} : vector<4x16xf32> to vector<1x16xf32>
    %18 = vector.broadcast %16 : vector<16x1xf32> to vector<16x16xf32>
    %19 = vector.broadcast %17 : vector<1x16xf32> to vector<16x16xf32>
    %20 = arith.mulf %18, %19 : vector<16x16xf32>
    %21 = arith.addf %12, %20 : vector<16x16xf32>
    %c2_i32 = arith.constant 2 : i32
    %22 = vector.broadcast %c2_i32 : i32 to vector<16x1xi32>
    %23 = arith.cmpi eq, %1, %22 : vector<16x1xi32>
    %24 = arith.extui %23 : vector<16x1xi1> to vector<16x1xi32>
    %25 = arith.sitofp %24 : vector<16x1xi32> to vector<16x1xf32>
    %26 = vector.extract_strided_slice %2 {offsets = [2, 0], sizes = [1, 16], strides = [1, 1]} : vector<4x16xf32> to vector<1x16xf32>
    %27 = vector.broadcast %25 : vector<16x1xf32> to vector<16x16xf32>
    %28 = vector.broadcast %26 : vector<1x16xf32> to vector<16x16xf32>
    %29 = arith.mulf %27, %28 : vector<16x16xf32>
    %30 = arith.addf %21, %29 : vector<16x16xf32>
    %c3_i32 = arith.constant 3 : i32
    %31 = vector.broadcast %c3_i32 : i32 to vector<16x1xi32>
    %32 = arith.cmpi eq, %1, %31 : vector<16x1xi32>
    %33 = arith.extui %32 : vector<16x1xi1> to vector<16x1xi32>
    %34 = arith.sitofp %33 : vector<16x1xi32> to vector<16x1xf32>
    %35 = vector.extract_strided_slice %2 {offsets = [3, 0], sizes = [1, 16], strides = [1, 1]} : vector<4x16xf32> to vector<1x16xf32>
    %36 = vector.broadcast %34 : vector<16x1xf32> to vector<16x16xf32>
    %37 = vector.broadcast %35 : vector<1x16xf32> to vector<16x16xf32>
    %38 = arith.mulf %36, %37 : vector<16x16xf32>
    %39 = arith.addf %30, %38 : vector<16x16xf32>
    %40 = arith.truncf %39 : vector<16x16xf32> to vector<16x16xbf16>
    %41 = arith.truncf %0 : vector<16x32xf32> to vector<16x32xbf16>
    %c0_5 = arith.constant 0 : index
    %c0_6 = arith.constant 0 : index
    %42 = vector.load %arg4[%c0_5, %c0_6] : memref<32x64xbf16, #tpu.memory_space<vmem>>, vector<32x64xbf16>
    %cst_7 = arith.constant dense<0.000000e+00> : vector<16x64xf32>
    %43 = tpu.matmul %41, %42, %cst_7 {dimension_numbers = #tpu.dot_dimension_numbers<[1], [0], [0], [1], [0, 0, 1, 1], [], []>} : vector<16x32xbf16>, vector<32x64xbf16>, vector<16x64xf32> -> vector<16x64xf32>
    %c0_8 = arith.constant 0 : index
    %c0_9 = arith.constant 0 : index
    %44 = vector.load %arg5[%c0_8, %c0_9] : memref<16x64xbf16, #tpu.memory_space<vmem>>, vector<16x64xbf16>
    %cst_10 = arith.constant dense<0.000000e+00> : vector<16x64xf32>
    %45 = tpu.matmul %40, %44, %cst_10 {dimension_numbers = #tpu.dot_dimension_numbers<[1], [0], [0], [1], [0, 0, 1, 1], [], []>} : vector<16x16xbf16>, vector<16x64xbf16>, vector<16x64xf32> -> vector<16x64xf32>
    %46 = arith.addf %43, %45 : vector<16x64xf32>
    %c0_11 = arith.constant 0 : index
    %c0_12 = arith.constant 0 : index
    %47 = vector.load %arg6[%c0_11, %c0_12] : memref<1x64xf32, #tpu.memory_space<vmem>>, vector<1x64xf32>
    %48 = vector.broadcast %47 : vector<1x64xf32> to vector<16x64xf32>
    %49 = arith.addf %46, %48 : vector<16x64xf32>
    %cst_13 = arith.constant 0.000000e+00 : f32
    %50 = vector.broadcast %cst_13 : f32 to vector<16x64xf32>
    %51 = arith.maximumf %49, %50 : vector<16x64xf32>
    %52 = arith.truncf %51 : vector<16x64xf32> to vector<16x64xbf16>
    %c0_14 = arith.constant 0 : index
    %c0_15 = arith.constant 0 : index
    %53 = vector.load %arg7[%c0_14, %c0_15] : memref<64x32xbf16, #tpu.memory_space<vmem>>, vector<64x32xbf16>
    %cst_16 = arith.constant dense<0.000000e+00> : vector<16x32xf32>
    %54 = tpu.matmul %52, %53, %cst_16 {dimension_numbers = #tpu.dot_dimension_numbers<[1], [0], [0], [1], [0, 0, 1, 1], [], []>} : vector<16x64xbf16>, vector<64x32xbf16>, vector<16x32xf32> -> vector<16x32xf32>
    %c0_17 = arith.constant 0 : index
    %c0_18 = arith.constant 0 : index
    %55 = vector.load %arg8[%c0_17, %c0_18] : memref<1x32xf32, #tpu.memory_space<vmem>>, vector<1x32xf32>
    %56 = vector.broadcast %55 : vector<1x32xf32> to vector<16x32xf32>
    %57 = arith.addf %54, %56 : vector<16x32xf32>
    %c0_19 = arith.constant 0 : index
    %c0_20 = arith.constant 0 : index
    %58 = vector.load %arg11[%c0_19, %c0_20] : memref<1x128xf32, #tpu.memory_space<vmem>>, vector<1x128xf32>
    %59 = arith.truncf %57 : vector<16x32xf32> to vector<16x32xbf16>
    %c0_21 = arith.constant 0 : index
    %c0_22 = arith.constant 0 : index
    %60 = vector.load %arg10[%c0_21, %c0_22] : memref<32x128xbf16, #tpu.memory_space<vmem>>, vector<32x128xbf16>
    %cst_23 = arith.constant dense<0.000000e+00> : vector<16x128xf32>
    %61 = tpu.matmul %59, %60, %cst_23 {dimension_numbers = #tpu.dot_dimension_numbers<[1], [0], [0], [1], [0, 0, 1, 1], [], []>} : vector<16x32xbf16>, vector<32x128xbf16>, vector<16x128xf32> -> vector<16x128xf32>
    %cst_24 = arith.constant 2.000000e+00 : f32
    %62 = vector.broadcast %cst_24 : f32 to vector<16x128xf32>
    %63 = arith.mulf %62, %61 : vector<16x128xf32>
    %64 = vector.broadcast %58 : vector<1x128xf32> to vector<16x128xf32>
    %65 = arith.subf %64, %63 : vector<16x128xf32>
    %66 = tpu.iota {dimensions = array<i32: 1>} : vector<16x128xi32>
    %cst_25 = arith.constant dense<0x7F800000> : vector<16xf32>
    %67 = vector.multi_reduction <minimumf>, %65, %cst_25 [1] : vector<16x128xf32> to vector<16xf32>
    %68 = vector.shape_cast %67 : vector<16xf32> to vector<16x1xf32>
    %69 = vector.broadcast %68 : vector<16x1xf32> to vector<16x128xf32>
    %70 = arith.cmpf ole, %65, %69 : vector<16x128xf32>
    %c128_i32 = arith.constant 128 : i32
    %71 = vector.broadcast %c128_i32 : i32 to vector<16x128xi32>
    %72 = arith.select %70, %66, %71 : vector<16x128xi1>, vector<16x128xi32>
    %cst_26 = arith.constant dense<2147483647> : vector<16xi32>
    %73 = vector.multi_reduction <minsi>, %72, %cst_26 [1] : vector<16x128xi32> to vector<16xi32>
    %74 = vector.shape_cast %73 : vector<16xi32> to vector<16x1xi32>
    %75 = vector.broadcast %74 : vector<16x1xi32> to vector<16x128xi32>
    %76 = arith.cmpi eq, %66, %75 : vector<16x128xi32>
    %77 = arith.extui %76 : vector<16x128xi1> to vector<16x128xi32>
    %78 = arith.sitofp %77 : vector<16x128xi32> to vector<16x128xf32>
    %79 = arith.truncf %78 : vector<16x128xf32> to vector<16x128xbf16>
    %c0_27 = arith.constant 0 : index
    %c0_28 = arith.constant 0 : index
    %80 = vector.load %arg9[%c0_27, %c0_28] : memref<128x32xbf16, #tpu.memory_space<vmem>>, vector<128x32xbf16>
    %cst_29 = arith.constant dense<0.000000e+00> : vector<16x32xf32>
    %81 = tpu.matmul %79, %80, %cst_29 {dimension_numbers = #tpu.dot_dimension_numbers<[1], [0], [0], [1], [0, 0, 1, 1], [], []>} : vector<16x128xbf16>, vector<128x32xbf16>, vector<16x32xf32> -> vector<16x32xf32>
    %82 = arith.truncf %81 : vector<16x32xf32> to vector<16x32xbf16>
    %c0_30 = arith.constant 0 : index
    %c0_31 = arith.constant 0 : index
    %83 = vector.load %arg12[%c0_30, %c0_31] : memref<32x64xbf16, #tpu.memory_space<vmem>>, vector<32x64xbf16>
    %cst_32 = arith.constant dense<0.000000e+00> : vector<16x64xf32>
    %84 = tpu.matmul %82, %83, %cst_32 {dimension_numbers = #tpu.dot_dimension_numbers<[1], [0], [0], [1], [0, 0, 1, 1], [], []>} : vector<16x32xbf16>, vector<32x64xbf16>, vector<16x64xf32> -> vector<16x64xf32>
    %c0_33 = arith.constant 0 : index
    %c0_34 = arith.constant 0 : index
    %85 = vector.load %arg13[%c0_33, %c0_34] : memref<16x64xbf16, #tpu.memory_space<vmem>>, vector<16x64xbf16>
    %cst_35 = arith.constant dense<0.000000e+00> : vector<16x64xf32>
    %86 = tpu.matmul %40, %85, %cst_35 {dimension_numbers = #tpu.dot_dimension_numbers<[1], [0], [0], [1], [0, 0, 1, 1], [], []>} : vector<16x16xbf16>, vector<16x64xbf16>, vector<16x64xf32> -> vector<16x64xf32>
    %87 = arith.addf %84, %86 : vector<16x64xf32>
    %c0_36 = arith.constant 0 : index
    %c0_37 = arith.constant 0 : index
    %88 = vector.load %arg14[%c0_36, %c0_37] : memref<1x64xf32, #tpu.memory_space<vmem>>, vector<1x64xf32>
    %89 = vector.broadcast %88 : vector<1x64xf32> to vector<16x64xf32>
    %90 = arith.addf %87, %89 : vector<16x64xf32>
    %cst_38 = arith.constant 0.000000e+00 : f32
    %91 = vector.broadcast %cst_38 : f32 to vector<16x64xf32>
    %92 = arith.maximumf %90, %91 : vector<16x64xf32>
    %93 = arith.truncf %92 : vector<16x64xf32> to vector<16x64xbf16>
    %c0_39 = arith.constant 0 : index
    %c0_40 = arith.constant 0 : index
    %94 = vector.load %arg15[%c0_39, %c0_40] : memref<64x32xbf16, #tpu.memory_space<vmem>>, vector<64x32xbf16>
    %cst_41 = arith.constant dense<0.000000e+00> : vector<16x32xf32>
    %95 = tpu.matmul %93, %94, %cst_41 {dimension_numbers = #tpu.dot_dimension_numbers<[1], [0], [0], [1], [0, 0, 1, 1], [], []>} : vector<16x64xbf16>, vector<64x32xbf16>, vector<16x32xf32> -> vector<16x32xf32>
    %c0_42 = arith.constant 0 : index
    %c0_43 = arith.constant 0 : index
    %96 = vector.load %arg16[%c0_42, %c0_43] : memref<1x32xf32, #tpu.memory_space<vmem>>, vector<1x32xf32>
    %97 = vector.broadcast %96 : vector<1x32xf32> to vector<16x32xf32>
    %98 = arith.addf %95, %97 : vector<16x32xf32>
    %c0_44 = arith.constant 0 : index
    %c0_45 = arith.constant 0 : index
    %99 = vector.load %arg17[%c0_44, %c0_45] : memref<16x32xf32, #tpu.memory_space<vmem>>, vector<16x32xf32>
    tpu.vector_store %arg17[%c0_44, %c0_45], %98 {strides = array<i32>} : memref<16x32xf32, #tpu.memory_space<vmem>>, vector<16x32xf32>,
    %c0_46 = arith.constant 0 : index
    %c0_47 = arith.constant 0 : index
    %100 = vector.load %arg18[%c0_46, %c0_47] : memref<16x32xf32, #tpu.memory_space<vmem>>, vector<16x32xf32>
    tpu.vector_store %arg18[%c0_46, %c0_47], %57 {strides = array<i32>} : memref<16x32xf32, #tpu.memory_space<vmem>>, vector<16x32xf32>,
    %c0_48 = arith.constant 0 : index
    %c0_49 = arith.constant 0 : index
    %101 = vector.load %arg19[%c0_48, %c0_49] : memref<16x32xf32, #tpu.memory_space<vmem>>, vector<16x32xf32>
    tpu.vector_store %arg19[%c0_48, %c0_49], %81 {strides = array<i32>} : memref<16x32xf32, #tpu.memory_space<vmem>>, vector<16x32xf32>,
    %c0_50 = arith.constant 0 : index
    %c0_51 = arith.constant 0 : index
    %102 = vector.load %arg20[%c0_50, %c0_51] : memref<16x1xi32, #tpu.memory_space<vmem>>, vector<16x1xi32>
    tpu.vector_store %arg20[%c0_50, %c0_51], %74 {strides = array<i32>} : memref<16x1xi32, #tpu.memory_space<vmem>>, vector<16x1xi32>,
    %103 = tpu.iota {dimensions = array<i32: 0>} : vector<16x1xi32>
    %c16_i32 = arith.constant 16 : i32
    %104 = arith.muli %arg0, %c16_i32 : i32
    %105 = vector.broadcast %104 : i32 to vector<16x1xi32>
    %106 = arith.addi %103, %105 : vector<16x1xi32>
    %c16_i32_52 = arith.constant 16 : i32
    %107 = vector.broadcast %c16_i32_52 : i32 to vector<16x1xi32>
    %108 = arith.cmpi slt, %106, %107 : vector<16x1xi32>
    %109 = arith.extui %108 : vector<16x1xi1> to vector<16x1xi32>
    %110 = arith.sitofp %109 : vector<16x1xi32> to vector<16x1xf32>
    %111 = arith.subf %98, %0 : vector<16x32xf32>
    %112 = arith.subf %57, %81 : vector<16x32xf32>
    %113 = vector.broadcast %110 : vector<16x1xf32> to vector<16x32xf32>
    %114 = arith.mulf %113, %111 : vector<16x32xf32>
    %115 = arith.mulf %114, %111 : vector<16x32xf32>
    %cst_53 = arith.constant dense<0.000000e+00> : vector<32xf32>
    %116 = vector.multi_reduction <add>, %115, %cst_53 [0] : vector<16x32xf32> to vector<32xf32>
    %117 = vector.shape_cast %116 : vector<32xf32> to vector<1x32xf32>
    %cst_54 = arith.constant dense<0.000000e+00> : vector<1xf32>
    %118 = vector.multi_reduction <add>, %117, %cst_54 [1] : vector<1x32xf32> to vector<1xf32>
    %119 = vector.shape_cast %118 : vector<1xf32> to vector<1x1xf32>
    %120 = vector.broadcast %110 : vector<16x1xf32> to vector<16x32xf32>
    %121 = arith.mulf %120, %112 : vector<16x32xf32>
    %122 = arith.mulf %121, %112 : vector<16x32xf32>
    %cst_55 = arith.constant dense<0.000000e+00> : vector<32xf32>
    %123 = vector.multi_reduction <add>, %122, %cst_55 [0] : vector<16x32xf32> to vector<32xf32>
    %124 = vector.shape_cast %123 : vector<32xf32> to vector<1x32xf32>
    %cst_56 = arith.constant dense<0.000000e+00> : vector<1xf32>
    %125 = vector.multi_reduction <add>, %124, %cst_56 [1] : vector<1x32xf32> to vector<1xf32>
    %126 = vector.shape_cast %125 : vector<1xf32> to vector<1x1xf32>
    %127 = tpu.iota {dimensions = array<i32: 0>} : vector<8x128xi32>
    %128 = tpu.iota {dimensions = array<i32: 1>} : vector<8x128xi32>
    %cst_57 = arith.constant 0.000000e+00 : f32
    %129 = vector.broadcast %cst_57 : f32 to vector<8x128xf32>
    %c0_i32_58 = arith.constant 0 : i32
    %130 = vector.broadcast %c0_i32_58 : i32 to vector<8x128xi32>
    %131 = arith.cmpi eq, %127, %130 : vector<8x128xi32>
    %c0_i32_59 = arith.constant 0 : i32
    %132 = vector.broadcast %c0_i32_59 : i32 to vector<8x128xi32>
    %133 = arith.cmpi eq, %128, %132 : vector<8x128xi32>
    %134 = arith.andi %131, %133 : vector<8x128xi1>
    %c0_i32_60 = arith.constant 0 : i32
    %135 = vector.broadcast %c0_i32_60 : i32 to vector<8x128xi32>
    %136 = arith.cmpi eq, %127, %135 : vector<8x128xi32>
    %c1_i32_61 = arith.constant 1 : i32
    %137 = vector.broadcast %c1_i32_61 : i32 to vector<8x128xi32>
    %138 = arith.cmpi eq, %128, %137 : vector<8x128xi32>
    %139 = arith.andi %136, %138 : vector<8x128xi1>
    %140 = vector.shape_cast %126 : vector<1x1xf32> to vector<1x1xf32>
    %141 = vector.broadcast %140 : vector<1x1xf32> to vector<8x128xf32>
    %142 = arith.select %139, %141, %129 : vector<8x128xi1>, vector<8x128xf32>
    %143 = vector.shape_cast %119 : vector<1x1xf32> to vector<1x1xf32>
    %144 = vector.broadcast %143 : vector<1x1xf32> to vector<8x128xf32>
    %145 = arith.select %134, %144, %142 : vector<8x128xi1>, vector<8x128xf32>
    %c0_62 = arith.constant 0 : index
    %c0_63 = arith.constant 0 : index
    %146 = vector.load %arg21[%c0_62, %c0_63] : memref<8x128xf32, #tpu.memory_space<vmem>>, vector<8x128xf32>
    tpu.vector_store %arg21[%c0_62, %c0_63], %145 {strides = array<i32>} : memref<8x128xf32, #tpu.memory_space<vmem>>, vector<8x128xf32>,
    return
  }
  func.func @transform_0(%arg0: i32) -> (i32, i32) {
    %c0_i32 = arith.constant 0 : i32
    %c0_i32_0 = arith.constant 0 : i32
    return %arg0, %c0_i32 : i32, i32
  }
  func.func @transform_1(%arg0: i32) -> (i32, i32) {
    %c0_i32 = arith.constant 0 : i32
    %c0_i32_0 = arith.constant 0 : i32
    return %arg0, %c0_i32 : i32, i32
  }
  func.func @transform_2(%arg0: i32) -> (i32, i32) {
    %c0_i32 = arith.constant 0 : i32
    %c0_i32_0 = arith.constant 0 : i32
    %c0_i32_1 = arith.constant 0 : i32
    return %c0_i32, %c0_i32_0 : i32, i32
  }
  func.func @transform_3(%arg0: i32) -> (i32, i32) {
    %c0_i32 = arith.constant 0 : i32
    %c0_i32_0 = arith.constant 0 : i32
    %c0_i32_1 = arith.constant 0 : i32
    return %c0_i32, %c0_i32_0 : i32, i32
  }
  func.func @transform_4(%arg0: i32) -> (i32, i32) {
    %c0_i32 = arith.constant 0 : i32
    %c0_i32_0 = arith.constant 0 : i32
    %c0_i32_1 = arith.constant 0 : i32
    return %c0_i32, %c0_i32_0 : i32, i32
  }
  func.func @transform_5(%arg0: i32) -> (i32, i32) {
    %c0_i32 = arith.constant 0 : i32
    %c0_i32_0 = arith.constant 0 : i32
    %c0_i32_1 = arith.constant 0 : i32
    return %c0_i32, %c0_i32_0 : i32, i32
  }
  func.func @transform_6(%arg0: i32) -> (i32, i32) {
    %c0_i32 = arith.constant 0 : i32
    %c0_i32_0 = arith.constant 0 : i32
    %c0_i32_1 = arith.constant 0 : i32
    return %c0_i32, %c0_i32_0 : i32, i32
  }
  func.func @transform_7(%arg0: i32) -> (i32, i32) {
    %c0_i32 = arith.constant 0 : i32
    %c0_i32_0 = arith.constant 0 : i32
    %c0_i32_1 = arith.constant 0 : i32
    return %c0_i32, %c0_i32_0 : i32, i32
  }
  func.func @transform_8(%arg0: i32) -> (i32, i32) {
    %c0_i32 = arith.constant 0 : i32
    %c0_i32_0 = arith.constant 0 : i32
    %c0_i32_1 = arith.constant 0 : i32
    return %c0_i32, %c0_i32_0 : i32, i32
  }
  func.func @transform_9(%arg0: i32) -> (i32, i32) {
    %c0_i32 = arith.constant 0 : i32
    %c0_i32_0 = arith.constant 0 : i32
    %c0_i32_1 = arith.constant 0 : i32
    return %c0_i32, %c0_i32_0 : i32, i32
  }
  func.func @transform_10(%arg0: i32) -> (i32, i32) {
    %c0_i32 = arith.constant 0 : i32
    %c0_i32_0 = arith.constant 0 : i32
    %c0_i32_1 = arith.constant 0 : i32
    return %c0_i32, %c0_i32_0 : i32, i32
  }
  func.func @transform_11(%arg0: i32) -> (i32, i32) {
    %c0_i32 = arith.constant 0 : i32
    %c0_i32_0 = arith.constant 0 : i32
    %c0_i32_1 = arith.constant 0 : i32
    return %c0_i32, %c0_i32_0 : i32, i32
  }
  func.func @transform_12(%arg0: i32) -> (i32, i32) {
    %c0_i32 = arith.constant 0 : i32
    %c0_i32_0 = arith.constant 0 : i32
    %c0_i32_1 = arith.constant 0 : i32
    return %c0_i32, %c0_i32_0 : i32, i32
  }
  func.func @transform_13(%arg0: i32) -> (i32, i32) {
    %c0_i32 = arith.constant 0 : i32
    %c0_i32_0 = arith.constant 0 : i32
    %c0_i32_1 = arith.constant 0 : i32
    return %c0_i32, %c0_i32_0 : i32, i32
  }
  func.func @transform_14(%arg0: i32) -> (i32, i32) {
    %c0_i32 = arith.constant 0 : i32
    %c0_i32_0 = arith.constant 0 : i32
    %c0_i32_1 = arith.constant 0 : i32
    return %c0_i32, %c0_i32_0 : i32, i32
  }
  func.func @transform_15(%arg0: i32) -> (i32, i32) {
    %c0_i32 = arith.constant 0 : i32
    %c0_i32_0 = arith.constant 0 : i32
    %c0_i32_1 = arith.constant 0 : i32
    return %c0_i32, %c0_i32_0 : i32, i32
  }
  func.func @transform_16(%arg0: i32) -> (i32, i32) {
    %c0_i32 = arith.constant 0 : i32
    %c0_i32_0 = arith.constant 0 : i32
    return %arg0, %c0_i32 : i32, i32
  }
  func.func @transform_17(%arg0: i32) -> (i32, i32) {
    %c0_i32 = arith.constant 0 : i32
    %c0_i32_0 = arith.constant 0 : i32
    return %arg0, %c0_i32 : i32, i32
  }
  func.func @transform_18(%arg0: i32) -> (i32, i32) {
    %c0_i32 = arith.constant 0 : i32
    %c0_i32_0 = arith.constant 0 : i32
    return %arg0, %c0_i32 : i32, i32
  }
  func.func @transform_19(%arg0: i32) -> (i32, i32) {
    %c0_i32 = arith.constant 0 : i32
    %c0_i32_0 = arith.constant 0 : i32
    return %arg0, %c0_i32 : i32, i32
  }
  func.func @transform_20(%arg0: i32) -> (i32, i32) {
    %c0_i32 = arith.constant 0 : i32
    %c0_i32_0 = arith.constant 0 : i32
    return %arg0, %c0_i32 : i32, i32
  }
}

</mosaic_0001>

<llo_original>
// kernel: squeeze.3
$region0: #{squeeze.3}
  %s0 = inlined_call_operand.vmem [shape: s32[16], index: 0, kind: input, shape index: {}]
  %s1 = inlined_call_operand.hbm [shape: s32[2,8], index: 1, kind: output, shape index: {}]
  $region1: #{squeeze.3} parent=0
    #allocation0 [shape = 'u8[1024]{0}', space=vmem, size = 0x400, scoped, tag = 'operand span for operand 1']
    #allocation1 [shape = 's32[1]{0}', space=sflag, size = 0x4, scoped, tag = 'scoped memory for squeeze.3']
    #allocation2 [shape = 'u8[4096]{0}', space=vmem, size = 0x1000, scoped, tag = 'scoped mem for output reshape']
    #allocation3 [shape = 'u8[4096]{0}', space=vmem, size = 0x1000, scoped, tag = 'scoped mem for input reshape']
    %2 = vsyncpa [#allocation1], 0
    %s4 = ssub.s32 2, 1
    %v5 = vld [vmem:[%s0] sm:%s4]
    %6 = vst [vmem:[#allocation3] sm:%s4] %v5
    %v7 = vld [vmem:[#allocation3] sm:$0x1]
    %vm8 = vcmask 64512
    %9 = vst.msk [vmem:[#allocation2] sm:$0x1] %vm8, %v7
    %v10 = vld [vmem:[#allocation3] sm:$0x1]
    %11 = vrot.lane.b32.xlu0 %v10, 120
    %v12 = vpop.permute.xlu0 %11
    %vm13 = vcmask 64512
    %s14 = scalar_lea.vmem [#allocation2], 1
    %15 = vst.msk [vmem:[%s14] sm:$0x1] %vm13, %v12
    %s17 = ssub.s32 4, 1
    %v18 = vld [vmem:[#allocation2] sm:%s17]
    %s20 = ssub.s32 4, 1
    %21 = vst [vmem:[#allocation0] sm:%s20] %v18
    %23 = vsyncadd [#allocation1], 0
    %s25 = sshll.u32 [#allocation0], 4
    %s26 = int_to_ptr.vmem [resolvable:$true] %s25
    %s27 = sshll.u32 %s1, 4
    %s28 = int_to_ptr.hbm [resolvable:$true] %s27
    %30 = dma.vmem_to_hbm [thread:$0]  %s26, 32, %s28, [#allocation1]
    %32 = dma.done [#allocation1], 32
    %33 = vsyncpa [#allocation1], 1

// kernel: tokenizer_forward.1
$region0: #{tokenizer_forward.1}
  #allocation0 [shape = 'u32[]', space=smem, size = 0x4, offset = 0x4, fixed_abs, tag = 'smem constant byte address 0x4 - core index']
  #allocation1 [shape = 'u32[72,128]{1,0:T(1,128)}', space=vmem, size = 0x9000, scoped, tag = 'internal scratch']
  %s0 = inlined_call_operand.vmem [shape: f32[16,32], index: 0, kind: input, shape index: {}]
  %s1 = inlined_call_operand.vmem [shape: s32[16,1], index: 1, kind: input, shape index: {}]
  %s2 = inlined_call_operand.vmem [shape: f32[4,16], index: 2, kind: input, shape index: {}]
  %s3 = inlined_call_operand.vmem [shape: bf16[32,64], index: 3, kind: input, shape index: {}]
  %s4 = inlined_call_operand.vmem [shape: bf16[16,64], index: 4, kind: input, shape index: {}]
  %s5 = inlined_call_operand.vmem [shape: f32[1,64], index: 5, kind: input, shape index: {}]
  %s6 = inlined_call_operand.vmem [shape: bf16[64,32], index: 6, kind: input, shape index: {}]
  %s7 = inlined_call_operand.vmem [shape: f32[1,32], index: 7, kind: input, shape index: {}]
  %s8 = inlined_call_operand.vmem [shape: bf16[128,32], index: 8, kind: input, shape index: {}]
  %s9 = inlined_call_operand.vmem [shape: bf16[32,128], index: 9, kind: input, shape index: {}]
  %s10 = inlined_call_operand.vmem [shape: f32[1,128], index: 10, kind: input, shape index: {}]
  %s11 = inlined_call_operand.vmem [shape: bf16[32,64], index: 11, kind: input, shape index: {}]
  %s12 = inlined_call_operand.vmem [shape: bf16[16,64], index: 12, kind: input, shape index: {}]
  %s13 = inlined_call_operand.vmem [shape: f32[1,64], index: 13, kind: input, shape index: {}]
  %s14 = inlined_call_operand.vmem [shape: bf16[64,32], index: 14, kind: input, shape index: {}]
  %s15 = inlined_call_operand.vmem [shape: f32[1,32], index: 15, kind: input, shape index: {}]
  %s16 = inlined_call_operand.hbm [shape: f32[16,32], index: 16, kind: output, shape index: {0}]
  %s17 = inlined_call_operand.vmem [shape: f32[16,32], index: 17, kind: output, shape index: {1}]
  %s18 = inlined_call_operand.vmem [shape: f32[16,32], index: 18, kind: output, shape index: {2}]
  %s19 = inlined_call_operand.vmem [shape: s32[16,1], index: 19, kind: output, shape index: {3}]
  %s20 = inlined_call_operand.vmem [shape: f32[8,128], index: 20, kind: output, shape index: {4}]
  %21 = xla_tuple %s16, %s17, %s18, %s19, %s20
  %s22 = sld [smem:[#allocation0]]
  $region106: #{tokenizer_forward.1} parent=0
    _
  %s24 = ssub.s32 1, %s22
  %s25 = scalar_select 0, %s24, %s22
  $region1: #{tokenizer_forward.1} parent=0
    #allocation2 [shape = 'u8[8192]{0}', space=vmem, size = 0x2000, scoped, tag = 'output window, operand 0, single buffered']
    #allocation3 [shape = 's32[1]{0}', space=sflag, size = 0x4, scoped, tag = 'scoped memory for tokenizer_forward.1']
    %26 = vsyncpa [#allocation3], 0
    // Predicated region
    $region2: #{tokenizer_forward.1} parent=1 // pred_check
      _
    $region3: #{tokenizer_forward.1} parent=1 // pred_check_branch
      %28 = sbr.rel (0) target = $region5
    $region4: #{tokenizer_forward.1} parent=1 // pred_region
      _
    $region5: #{tokenizer_forward.1} parent=1 // pred_fallthru
      _
    // Predicated region
    $region6: #{tokenizer_forward.1} parent=1 // pred_check
      _
    $region7: #{tokenizer_forward.1} parent=1 // pred_check_branch
      %30 = sbr.rel (0) target = $region9
    $region8: #{tokenizer_forward.1} parent=1 // pred_region
      _
    $region9: #{tokenizer_forward.1} parent=1 // pred_fallthru
      _
    // Predicated region
    $region10: #{tokenizer_forward.1} parent=1 // pred_check
      _
    $region11: #{tokenizer_forward.1} parent=1 // pred_check_branch
      %32 = sbr.rel (0) target = $region13
    $region12: #{tokenizer_forward.1} parent=1 // pred_region
      _
    $region13: #{tokenizer_forward.1} parent=1 // pred_fallthru
      _
    // Predicated region
    $region14: #{tokenizer_forward.1} parent=1 // pred_check
      _
    $region15: #{tokenizer_forward.1} parent=1 // pred_check_branch
      %34 = sbr.rel (0) target = $region17
    $region16: #{tokenizer_forward.1} parent=1 // pred_region
      _
    $region17: #{tokenizer_forward.1} parent=1 // pred_fallthru
      _
    // Predicated region
    $region18: #{tokenizer_forward.1} parent=1 // pred_check
      _
    $region19: #{tokenizer_forward.1} parent=1 // pred_check_branch
      %36 = sbr.rel (0) target = $region21
    $region20: #{tokenizer_forward.1} parent=1 // pred_region
      _
    $region21: #{tokenizer_forward.1} parent=1 // pred_fallthru
      _
    // Predicated region
    $region22: #{tokenizer_forward.1} parent=1 // pred_check
      _
    $region23: #{tokenizer_forward.1} parent=1 // pred_check_branch
      %38 = sbr.rel (0) target = $region25
    $region24: #{tokenizer_forward.1} parent=1 // pred_region
      _
    $region25: #{tokenizer_forward.1} parent=1 // pred_fallthru
      _
    // Predicated region
    $region26: #{tokenizer_forward.1} parent=1 // pred_check
      _
    $region27: #{tokenizer_forward.1} parent=1 // pred_check_branch
      %40 = sbr.rel (0) target = $region29
    $region28: #{tokenizer_forward.1} parent=1 // pred_region
      _
    $region29: #{tokenizer_forward.1} parent=1 // pred_fallthru
      _
    // Predicated region
    $region30: #{tokenizer_forward.1} parent=1 // pred_check
      _
    $region31: #{tokenizer_forward.1} parent=1 // pred_check_branch
      %42 = sbr.rel (0) target = $region33
    $region32: #{tokenizer_forward.1} parent=1 // pred_region
      _
    $region33: #{tokenizer_forward.1} parent=1 // pred_fallthru
      _
    // Predicated region
    $region34: #{tokenizer_forward.1} parent=1 // pred_check
      _
    $region35: #{tokenizer_forward.1} parent=1 // pred_check_branch
      %44 = sbr.rel (0) target = $region37
    $region36: #{tokenizer_forward.1} parent=1 // pred_region
      _
    $region37: #{tokenizer_forward.1} parent=1 // pred_fallthru
      _
    // Predicated region
    $region38: #{tokenizer_forward.1} parent=1 // pred_check
      _
    $region39: #{tokenizer_forward.1} parent=1 // pred_check_branch
      %46 = sbr.rel (0) target = $region41
    $region40: #{tokenizer_forward.1} parent=1 // pred_region
      _
    $region41: #{tokenizer_forward.1} parent=1 // pred_fallthru
      _
    // Predicated region
    $region42: #{tokenizer_forward.1} parent=1 // pred_check
      _
    $region43: #{tokenizer_forward.1} parent=1 // pred_check_branch
      %48 = sbr.rel (0) target = $region45
    $region44: #{tokenizer_forward.1} parent=1 // pred_region
      _
    $region45: #{tokenizer_forward.1} parent=1 // pred_fallthru
      _
    // Predicated region
    $region46: #{tokenizer_forward.1} parent=1 // pred_check
      _
    $region47: #{tokenizer_forward.1} parent=1 // pred_check_branch
      %50 = sbr.rel (0) target = $region49
    $region48: #{tokenizer_forward.1} parent=1 // pred_region
      _
    $region49: #{tokenizer_forward.1} parent=1 // pred_fallthru
      _
    // Predicated region
    $region50: #{tokenizer_forward.1} parent=1 // pred_check
      _
    $region51: #{tokenizer_forward.1} parent=1 // pred_check_branch
      %52 = sbr.rel (0) target = $region53
    $region52: #{tokenizer_forward.1} parent=1 // pred_region
      _
    $region53: #{tokenizer_forward.1} parent=1 // pred_fallthru
      _
    // Predicated region
    $region54: #{tokenizer_forward.1} parent=1 // pred_check
      _
    $region55: #{tokenizer_forward.1} parent=1 // pred_check_branch
      %54 = sbr.rel (0) target = $region57
    $region56: #{tokenizer_forward.1} parent=1 // pred_region
      _
    $region57: #{tokenizer_forward.1} parent=1 // pred_fallthru
      _
    // Predicated region
    $region58: #{tokenizer_forward.1} parent=1 // pred_check
      _
    $region59: #{tokenizer_forward.1} parent=1 // pred_check_branch
      %56 = sbr.rel (0) target = $region61
    $region60: #{tokenizer_forward.1} parent=1 // pred_region
      _
    $region61: #{tokenizer_forward.1} parent=1 // pred_fallthru
      _
    // Predicated region
    $region62: #{tokenizer_forward.1} parent=1 // pred_check
      _
    $region63: #{tokenizer_forward.1} parent=1 // pred_check_branch
      %58 = sbr.rel (0) target = $region65
    $region64: #{tokenizer_forward.1} parent=1 // pred_region
      _
    $region65: #{tokenizer_forward.1} parent=1 // pred_fallthru
      _
    %v60 = vld [vmem:[%s0] sm:$0xff]
    %v61 = vld [vmem:[%s0 + $0x8] sm:$0xff]
    %v62 = vld [vmem:[%s1] sm:$0xff]
    %v63 = vld [vmem:[%s1 + $0x8] sm:$0xff]
    %v64 = vld [vmem:[%s2] sm:$0xf]
    %vm65 = vcmp.eq.s32.totalorder %v62, 0
    %vm66 = vcmp.eq.s32.totalorder %v63, 0
    %v67 = vsel %vm65, 1, 0
    %v68 = vsel %vm66, 1, 0
    %v69 = vcvt.s32.f32 %v67
    %v70 = vcvt.s32.f32 %v68
    %72 = vset.pattern.permute.xlu0 0
    %73 = vperm.xlu0 %72, %v69
    %v74 = vpop.permute.xlu0 %73
    %77 = vset.pattern.permute.xlu0 0
    %78 = vperm.xlu0 %77, %v70
    %v79 = vpop.permute.xlu0 %78
    %v81 = vperm.slane %v64, 0
    %v82 = vmul.f32 %v74, %v81
    %v83 = vmul.f32 %v79, %v81
    %v84 = vadd.f32 %v82, 0.0
    %v85 = vadd.f32 %v83, 0.0
    %vm86 = vcmp.eq.s32.totalorder %v62, 1
    %vm87 = vcmp.eq.s32.totalorder %v63, 1
    %v88 = vsel %vm86, 1, 0
    %v89 = vsel %vm87, 1, 0
    %v90 = vcvt.s32.f32 %v88
    %v91 = vcvt.s32.f32 %v89
    %93 = vset.pattern.permute.xlu0 0
    %94 = vperm.xlu0 %93, %v90
    %v95 = vpop.permute.xlu0 %94
    %98 = vset.pattern.permute.xlu0 0
    %99 = vperm.xlu0 %98, %v91
    %v100 = vpop.permute.xlu0 %99
    %v102 = vperm.slane %v64, 1
    %v103 = vmul.f32 %v95, %v102
    %v104 = vmul.f32 %v100, %v102
    %v105 = vadd.f32 %v84, %v103
    %v106 = vadd.f32 %v85, %v104
    %vm107 = vcmp.eq.s32.totalorder %v62, 2
    %vm108 = vcmp.eq.s32.totalorder %v63, 2
    %v109 = vsel %vm107, 1, 0
    %v110 = vsel %vm108, 1, 0
    %v111 = vcvt.s32.f32 %v109
    %v112 = vcvt.s32.f32 %v110
    %114 = vset.pattern.permute.xlu0 0
    %115 = vperm.xlu0 %114, %v111
    %v116 = vpop.permute.xlu0 %115
    %119 = vset.pattern.permute.xlu0 0
    %120 = vperm.xlu0 %119, %v112
    %v121 = vpop.permute.xlu0 %120
    %v123 = vperm.slane %v64, 2
    %v124 = vmul.f32 %v116, %v123
    %v125 = vmul.f32 %v121, %v123
    %v126 = vadd.f32 %v105, %v124
    %v127 = vadd.f32 %v106, %v125
    %vm128 = vcmp.eq.s32.totalorder %v62, 3
    %vm129 = vcmp.eq.s32.totalorder %v63, 3
    %v130 = vsel %vm128, 1, 0
    %v131 = vsel %vm129, 1, 0
    %v132 = vcvt.s32.f32 %v130
    %v133 = vcvt.s32.f32 %v131
    %135 = vset.pattern.permute.xlu0 0
    %136 = vperm.xlu0 %135, %v132
    %v137 = vpop.permute.xlu0 %136
    %140 = vset.pattern.permute.xlu0 0
    %141 = vperm.xlu0 %140, %v133
    %v142 = vpop.permute.xlu0 %141
    %v144 = vperm.slane %v64, 3
    %v145 = vmul.f32 %v137, %v144
    %v146 = vmul.f32 %v142, %v144
    %v147 = vadd.f32 %v126, %v145
    %v148 = vadd.f32 %v127, %v146
    %v149 = vpack.c.bf16 %v148, %v147
    %v150 = vpack.c.bf16 %v61, %v60
    %v151 = vld [vmem:[%s3] sm:$0xf]
    %v152 = vld [vmem:[%s3 + $0x4] sm:$0xf]
    %v153 = vld [vmem:[%s3 + $0x8] sm:$0xf]
    %v154 = vld [vmem:[%s3 + $0xc] sm:$0xf]
    %v155 = vld [vmem:[%s4] sm:$0xf]
    %v156 = vld [vmem:[%s4 + $0x4] sm:$0xf]
    %v159 = vunpack.c.l.b16 %v155
    %v160 = vunpack.c.l.b16 %v156
    %v161 = vpack.c.b16 %v160, %v159
    %vm163 = vcmask 130048
    %v165 = vsel %vm163, %v149, 0
    %167 = vmatpush.bf16.msra.mxu0 0
    %168 = vmatpush.bf16.msra.mxu0 0
    %169 = vmatpush.bf16.msra.mxu0 0
    %170 = vmatpush.bf16.msra.mxu0 0
    %171 = vmatpush.bf16.msra.mxu0 0
    %172 = vmatpush.bf16.msra.mxu0 0
    %173 = vmatpush.bf16.msra.mxu0 0
    %174 = vmatpush.bf16.msra.mxu0 %v161
    %175 = vmatmul.bf16.gmra.mxu0 %v165
    %v176 = vpop.f32.mrf.mxu0
    %v177 = vadd.f32 0.0, %v176
    %v178 = vpop.f32.mrf.mxu0
    %v179 = vadd.f32 0.0, %v178
    %180 = vdwg.mxu0
    %v185 = vunpack.c.l.b16 %v151
    %v186 = vunpack.c.l.b16 %v152
    %v187 = vunpack.c.l.b16 %v153
    %v188 = vunpack.c.l.b16 %v154
    %v189 = vpack.c.b16 %v186, %v185
    %v190 = vpack.c.b16 %v188, %v187
    %vm193 = vcmask 261120
    %v195 = vsel %vm193, %v150, 0
    %197 = vmatpush.bf16.msra.mxu0 0
    %198 = vmatpush.bf16.msra.mxu0 0
    %199 = vmatpush.bf16.msra.mxu0 0
    %200 = vmatpush.bf16.msra.mxu0 0
    %201 = vmatpush.bf16.msra.mxu0 0
    %202 = vmatpush.bf16.msra.mxu0 0
    %203 = vmatpush.bf16.msra.mxu0 %v190
    %204 = vmatpush.bf16.msra.mxu0 %v189
    %205 = vmatmul.bf16.gmra.mxu0 %v195
    %v206 = vpop.f32.mrf.mxu0
    %v207 = vadd.f32 %v177, %v206
    %v208 = vpop.f32.mrf.mxu0
    %v209 = vadd.f32 %v179, %v208
    %210 = vdwg.mxu0
    %v211 = vld [vmem:[%s5] sm:$0x1]
    %v213 = vperm.slane %v211, 0
    %v215 = vadd.f32 %v207, %v213
    %v216 = vadd.f32 %v209, %v213
    %v217 = vmax.f32 %v215, 0.0
    %v218 = vmax.f32 %v216, 0.0
    %v219 = vpack.c.bf16 %v218, %v217
    %v220 = vld [vmem:[%s6] sm:$0xf]
    %v221 = vld [vmem:[%s6 + $0x4] sm:$0xf]
    %v222 = vld [vmem:[%s6 + $0x8] sm:$0xf]
    %v223 = vld [vmem:[%s6 + $0xc] sm:$0xf]
    %v224 = vld [vmem:[%s6 + $0x10] sm:$0xf]
    %v225 = vld [vmem:[%s6 + $0x14] sm:$0xf]
    %v226 = vld [vmem:[%s6 + $0x18] sm:$0xf]
    %v227 = vld [vmem:[%s6 + $0x1c] sm:$0xf]
    %v228 = vld [vmem:[%s7] sm:$0x1]
    %v230 = vperm.slane %v228, 0
    %v240 = vunpack.c.l.b16 %v220
    %v241 = vunpack.c.l.b16 %v221
    %v242 = vunpack.c.l.b16 %v222
    %v243 = vunpack.c.l.b16 %v223
    %v244 = vunpack.c.l.b16 %v224
    %v245 = vunpack.c.l.b16 %v225
    %v246 = vunpack.c.l.b16 %v226
    %v247 = vunpack.c.l.b16 %v227
    %v248 = vpack.c.b16 %v241, %v240
    %v249 = vpack.c.b16 %v243, %v242
    %v250 = vpack.c.b16 %v245, %v244
    %v251 = vpack.c.b16 %v247, %v246
    %vm256 = vcmask 523264
    %v258 = vsel %vm256, %v219, 0
    %260 = vmatpush.bf16.msra.mxu0 0
    %261 = vmatpush.bf16.msra.mxu0 0
    %262 = vmatpush.bf16.msra.mxu0 0
    %263 = vmatpush.bf16.msra.mxu0 0
    %264 = vmatpush.bf16.msra.mxu0 %v251
    %265 = vmatpush.bf16.msra.mxu0 %v250
    %266 = vmatpush.bf16.msra.mxu0 %v249
    %267 = vmatpush.bf16.msra.mxu0 %v248
    %268 = vmatmul.bf16.gmra.mxu0 %v258
    %v269 = vpop.f32.mrf.mxu0
    %v270 = vadd.f32 %v230, %v269
    %v271 = vpop.f32.mrf.mxu0
    %v272 = vadd.f32 %v230, %v271
    %273 = vdwg.mxu0
    %v274 = vld [vmem:[%s10] sm:$0x1]
    %v275 = vpack.c.bf16 %v272, %v270
    %v276 = vld [vmem:[%s9] sm:$0xf]
    %v277 = vld [vmem:[%s9 + $0x4] sm:$0xf]
    %v278 = vld [vmem:[%s9 + $0x8] sm:$0xf]
    %v279 = vld [vmem:[%s9 + $0xc] sm:$0xf]
    %v284 = vunpack.c.l.b16 %v276
    %v285 = vunpack.c.l.b16 %v277
    %v286 = vunpack.c.l.b16 %v278
    %v287 = vunpack.c.l.b16 %v279
    %v288 = vpack.c.b16 %v285, %v284
    %v289 = vpack.c.b16 %v287, %v286
    %v293 = vsel %vm193, %v275, 0
    %295 = vmatpush.bf16.msra.mxu0 0
    %296 = vmatpush.bf16.msra.mxu0 0
    %297 = vmatpush.bf16.msra.mxu0 0
    %298 = vmatpush.bf16.msra.mxu0 0
    %299 = vmatpush.bf16.msra.mxu0 0
    %300 = vmatpush.bf16.msra.mxu0 0
    %301 = vmatpush.bf16.msra.mxu0 %v289
    %302 = vmatpush.bf16.msra.mxu0 %v288
    %303 = vmatmul.bf16.gmra.mxu0 %v293
    %v304 = vpop.f32.mrf.mxu0
    %v305 = vadd.f32 0.0, %v304
    %v306 = vpop.f32.mrf.mxu0
    %v307 = vadd.f32 0.0, %v306
    %308 = vdwg.mxu0
    %v309 = vmul.f32 %v305, 2.0
    %v310 = vmul.f32 %v307, 2.0
    %v312 = vperm.slane %v274, 0
    %v314 = vsub.f32 %v312, %v309
    %v315 = vsub.f32 %v312, %v310
    %v316 = vlaneseq
    %v317 = vand.u32 %v316, 127
    %318 = vmin.xlane.f32.xlu0 %v314
    %v319 = vpop.xlane.xlu0 %318
    %320 = vmin.xlane.f32.xlu0 %v315
    %v321 = vpop.xlane.xlu0 %320
    %vm322 = vcmp.le.f32.partialorder %v314, %v319
    %vm323 = vcmp.le.f32.partialorder %v315, %v321
    %v324 = vsel %vm322, %v317, 128
    %v325 = vsel %vm323, %v317, 128
    %v326 = vand.u32 %v324, 65535
    %v327 = vshra.s32 %v324, 16
    %v328 = vcvt.s32.f32 %v326
    %v329 = vcvt.s32.f32 %v327
    %330 = vmin.xlane.f32.xlu0 %v329
    %v331 = vpop.xlane.xlu0 %330
    %vm332 = vcmp.eq.f32.partialorder %v329, %v331
    %v333 = vsel %vm332, %v328, inf
    %334 = vmin.xlane.f32.xlu0 %v333
    %v335 = vpop.xlane.xlu0 %334
    %v336 = vcvt.f32.s32 %v335
    %v337 = vcvt.f32.s32 %v331
    %v338 = vshll.u32 %v337, 16
    %v339 = vadd.s32 %v338, %v336
    %v340 = vand.u32 %v325, 65535
    %v341 = vshra.s32 %v325, 16
    %v342 = vcvt.s32.f32 %v340
    %v343 = vcvt.s32.f32 %v341
    %344 = vmin.xlane.f32.xlu0 %v343
    %v345 = vpop.xlane.xlu0 %344
    %vm346 = vcmp.eq.f32.partialorder %v343, %v345
    %v347 = vsel %vm346, %v342, inf
    %348 = vmin.xlane.f32.xlu0 %v347
    %v349 = vpop.xlane.xlu0 %348
    %v350 = vcvt.f32.s32 %v349
    %v351 = vcvt.f32.s32 %v345
    %v352 = vshll.u32 %v351, 16
    %v353 = vadd.s32 %v352, %v350
    %vm354 = vcmp.eq.s32.totalorder %v317, %v339
    %vm355 = vcmp.eq.s32.totalorder %v317, %v353
    %v356 = vsel %vm354, 1, 0
    %v357 = vsel %vm355, 1, 0
    %v358 = vcvt.s32.f32 %v356
    %v359 = vcvt.s32.f32 %v357
    %v360 = vpack.c.bf16 %v359, %v358
    %v361 = vld [vmem:[%s8] sm:$0xf]
    %v362 = vld [vmem:[%s8 + $0x4] sm:$0xf]
    %v363 = vld [vmem:[%s8 + $0x8] sm:$0xf]
    %v364 = vld [vmem:[%s8 + $0xc] sm:$0xf]
    %v365 = vld [vmem:[%s8 + $0x10] sm:$0xf]
    %v366 = vld [vmem:[%s8 + $0x14] sm:$0xf]
    %v367 = vld [vmem:[%s8 + $0x18] sm:$0xf]
    %v368 = vld [vmem:[%s8 + $0x1c] sm:$0xf]
    %v369 = vld [vmem:[%s8 + $0x20] sm:$0xf]
    %v370 = vld [vmem:[%s8 + $0x24] sm:$0xf]
    %v371 = vld [vmem:[%s8 + $0x28] sm:$0xf]
    %v372 = vld [vmem:[%s8 + $0x2c] sm:$0xf]
    %v373 = vld [vmem:[%s8 + $0x30] sm:$0xf]
    %v374 = vld [vmem:[%s8 + $0x34] sm:$0xf]
    %v375 = vld [vmem:[%s8 + $0x38] sm:$0xf]
    %v376 = vld [vmem:[%s8 + $0x3c] sm:$0xf]
    %v393 = vunpack.c.l.b16 %v361
    %v394 = vunpack.c.l.b16 %v362
    %v395 = vunpack.c.l.b16 %v363
    %v396 = vunpack.c.l.b16 %v364
    %v397 = vunpack.c.l.b16 %v365
    %v398 = vunpack.c.l.b16 %v366
    %v399 = vunpack.c.l.b16 %v367
    %v400 = vunpack.c.l.b16 %v368
    %v401 = vunpack.c.l.b16 %v369
    %v402 = vunpack.c.l.b16 %v370
    %v403 = vunpack.c.l.b16 %v371
    %v404 = vunpack.c.l.b16 %v372
    %v405 = vunpack.c.l.b16 %v373
    %v406 = vunpack.c.l.b16 %v374
    %v407 = vunpack.c.l.b16 %v375
    %v408 = vunpack.c.l.b16 %v376
    %v409 = vpack.c.b16 %v394, %v393
    %v410 = vpack.c.b16 %v396, %v395
    %v411 = vpack.c.b16 %v398, %v397
    %v412 = vpack.c.b16 %v400, %v399
    %v413 = vpack.c.b16 %v402, %v401
    %v414 = vpack.c.b16 %v404, %v403
    %v415 = vpack.c.b16 %v406, %v405
    %v416 = vpack.c.b16 %v408, %v407
    %425 = vmatpush.bf16.msra.mxu0 %v416
    %426 = vmatpush.bf16.msra.mxu0 %v415
    %427 = vmatpush.bf16.msra.mxu0 %v414
    %428 = vmatpush.bf16.msra.mxu0 %v413
    %429 = vmatpush.bf16.msra.mxu0 %v412
    %430 = vmatpush.bf16.msra.mxu0 %v411
    %431 = vmatpush.bf16.msra.mxu0 %v410
    %432 = vmatpush.bf16.msra.mxu0 %v409
    %433 = vmatmul.bf16.gmra.mxu0 %v360
    %v434 = vpop.f32.mrf.mxu0
    %v435 = vadd.f32 0.0, %v434
    %v436 = vpop.f32.mrf.mxu0
    %v437 = vadd.f32 0.0, %v436
    %438 = vdwg.mxu0
    %v439 = vpack.c.bf16 %v437, %v435
    %v440 = vld [vmem:[%s11] sm:$0xf]
    %v441 = vld [vmem:[%s11 + $0x4] sm:$0xf]
    %v442 = vld [vmem:[%s11 + $0x8] sm:$0xf]
    %v443 = vld [vmem:[%s11 + $0xc] sm:$0xf]
    %v444 = vld [vmem:[%s12] sm:$0xf]
    %v445 = vld [vmem:[%s12 + $0x4] sm:$0xf]
    %v448 = vunpack.c.l.b16 %v444
    %v449 = vunpack.c.l.b16 %v445
    %v450 = vpack.c.b16 %v449, %v448
    %452 = vmatpush.bf16.msra.mxu0 0
    %453 = vmatpush.bf16.msra.mxu0 0
    %454 = vmatpush.bf16.msra.mxu0 0
    %455 = vmatpush.bf16.msra.mxu0 0
    %456 = vmatpush.bf16.msra.mxu0 0
    %457 = vmatpush.bf16.msra.mxu0 0
    %458 = vmatpush.bf16.msra.mxu0 0
    %459 = vmatpush.bf16.msra.mxu0 %v450
    %460 = vmatmul.bf16.gmra.mxu0 %v165
    %v461 = vpop.f32.mrf.mxu0
    %v462 = vadd.f32 0.0, %v461
    %v463 = vpop.f32.mrf.mxu0
    %v464 = vadd.f32 0.0, %v463
    %465 = vdwg.mxu0
    %v470 = vunpack.c.l.b16 %v440
    %v471 = vunpack.c.l.b16 %v441
    %v472 = vunpack.c.l.b16 %v442
    %v473 = vunpack.c.l.b16 %v443
    %v474 = vpack.c.b16 %v471, %v470
    %v475 = vpack.c.b16 %v473, %v472
    %v479 = vsel %vm193, %v439, 0
    %481 = vmatpush.bf16.msra.mxu0 0
    %482 = vmatpush.bf16.msra.mxu0 0
    %483 = vmatpush.bf16.msra.mxu0 0
    %484 = vmatpush.bf16.msra.mxu0 0
    %485 = vmatpush.bf16.msra.mxu0 0
    %486 = vmatpush.bf16.msra.mxu0 0
    %487 = vmatpush.bf16.msra.mxu0 %v475
    %488 = vmatpush.bf16.msra.mxu0 %v474
    %489 = vmatmul.bf16.gmra.mxu0 %v479
    %v490 = vpop.f32.mrf.mxu0
    %v491 = vadd.f32 %v462, %v490
    %v492 = vpop.f32.mrf.mxu0
    %v493 = vadd.f32 %v464, %v492
    %494 = vdwg.mxu0
    %v495 = vld [vmem:[%s13] sm:$0x1]
    %v497 = vperm.slane %v495, 0
    %v499 = vadd.f32 %v491, %v497
    %v500 = vadd.f32 %v493, %v497
    %v501 = vmax.f32 %v499, 0.0
    %v502 = vmax.f32 %v500, 0.0
    %v503 = vpack.c.bf16 %v502, %v501
    %v504 = vld [vmem:[%s14] sm:$0xf]
    %v505 = vld [vmem:[%s14 + $0x4] sm:$0xf]
    %v506 = vld [vmem:[%s14 + $0x8] sm:$0xf]
    %v507 = vld [vmem:[%s14 + $0xc] sm:$0xf]
    %v508 = vld [vmem:[%s14 + $0x10] sm:$0xf]
    %v509 = vld [vmem:[%s14 + $0x14] sm:$0xf]
    %v510 = vld [vmem:[%s14 + $0x18] sm:$0xf]
    %v511 = vld [vmem:[%s14 + $0x1c] sm:$0xf]
    %v512 = vld [vmem:[%s15] sm:$0x1]
    %v514 = vperm.slane %v512, 0
    %v524 = vunpack.c.l.b16 %v504
    %v525 = vunpack.c.l.b16 %v505
    %v526 = vunpack.c.l.b16 %v506
    %v527 = vunpack.c.l.b16 %v507
    %v528 = vunpack.c.l.b16 %v508
    %v529 = vunpack.c.l.b16 %v509
    %v530 = vunpack.c.l.b16 %v510
    %v531 = vunpack.c.l.b16 %v511
    %v532 = vpack.c.b16 %v525, %v524
    %v533 = vpack.c.b16 %v527, %v526
    %v534 = vpack.c.b16 %v529, %v528
    %v535 = vpack.c.b16 %v531, %v530
    %v541 = vsel %vm256, %v503, 0
    %543 = vmatpush.bf16.msra.mxu0 0
    %544 = vmatpush.bf16.msra.mxu0 0
    %545 = vmatpush.bf16.msra.mxu0 0
    %546 = vmatpush.bf16.msra.mxu0 0
    %547 = vmatpush.bf16.msra.mxu0 %v535
    %548 = vmatpush.bf16.msra.mxu0 %v534
    %549 = vmatpush.bf16.msra.mxu0 %v533
    %550 = vmatpush.bf16.msra.mxu0 %v532
    %551 = vmatmul.bf16.gmra.mxu0 %v541
    %v552 = vpop.f32.mrf.mxu0
    %v553 = vadd.f32 %v514, %v552
    %v554 = vpop.f32.mrf.mxu0
    %v555 = vadd.f32 %v514, %v554
    %556 = vdwg.mxu0
    %557 = vst.msk [vmem:[#allocation2] sm:$0xff] %vm193, %v553
    %558 = vst.msk [vmem:[#allocation2 + $0x8] sm:$0xff] %vm193, %v555
    %559 = vst.msk [vmem:[%s17] sm:$0xff] %vm193, %v270
    %560 = vst.msk [vmem:[%s17 + $0x8] sm:$0xff] %vm193, %v272
    %561 = vst.msk [vmem:[%s18] sm:$0xff] %vm193, %v435
    %562 = vst.msk [vmem:[%s18 + $0x8] sm:$0xff] %vm193, %v437
    %vm563 = vcmask 7168
    %564 = vst.msk [vmem:[%s19] sm:$0xff] %vm563, %v339
    %565 = vst.msk [vmem:[%s19 + $0x8] sm:$0xff] %vm563, %v353
    %v566 = vlaneseq
    %v567 = vshrl.u32 %v566, 7
    %v568 = vadd.s32 %v567, 8
    %s569 = smul.u32 0, 16
    %v570 = vstv %s569
    %v571 = vadd.s32 %v567, %v570
    %v572 = vadd.s32 %v568, %v570
    %vm573 = vcmp.lt.s32.totalorder %v571, 16
    %vm574 = vcmp.lt.s32.totalorder %v572, 16
    %v575 = vsel %vm573, 1, 0
    %v576 = vsel %vm574, 1, 0
    %v577 = vcvt.s32.f32 %v575
    %v578 = vcvt.s32.f32 %v576
    %v579 = vsub.f32 %v553, %v60
    %v580 = vsub.f32 %v555, %v61
    %v581 = vsub.f32 %v270, %v435
    %v582 = vsub.f32 %v272, %v437
    %v583 = vmul.f32 %v577, %v579
    %v584 = vmul.f32 %v578, %v580
    %v585 = vmul.f32 %v583, %v579
    %v586 = vmul.f32 %v584, %v580
    %v587 = vsel %vm193, %v585, 0.0
    %v588 = vsel %vm193, %v586, 0.0
    %v589 = vadd.f32 %v587, %v588
    %v590 = vrot.slane %v589, 4
    %v591 = vadd.f32 %v589, %v590
    %v592 = vrot.slane %v591, 2
    %v593 = vadd.f32 %v591, %v592
    %v594 = vrot.slane %v593, 1
    %v595 = vadd.f32 %v593, %v594
    %v596 = vsel %vm193, %v595, 0.0
    %597 = vadd.xlane.f32.xlu0 %v596
    %v598 = vpop.xlane.xlu0 %597
    %v599 = vmul.f32 %v577, %v581
    %v600 = vmul.f32 %v578, %v582
    %v601 = vmul.f32 %v599, %v581
    %v602 = vmul.f32 %v600, %v582
    %v603 = vsel %vm193, %v601, 0.0
    %v604 = vsel %vm193, %v602, 0.0
    %v605 = vadd.f32 %v603, %v604
    %v606 = vrot.slane %v605, 4
    %v607 = vadd.f32 %v605, %v606
    %v608 = vrot.slane %v607, 2
    %v609 = vadd.f32 %v607, %v608
    %v610 = vrot.slane %v609, 1
    %v611 = vadd.f32 %v609, %v610
    %v612 = vsel %vm193, %v611, 0.0
    %613 = vadd.xlane.f32.xlu0 %v612
    %v614 = vpop.xlane.xlu0 %613
    %vm615 = vcmp.eq.s32.totalorder %v567, 0
    %vm616 = vcmp.eq.s32.totalorder %v317, 0
    %vm617 = vmand %vm615, %vm616
    %vm618 = vcmp.eq.s32.totalorder %v317, 1
    %vm619 = vmand %vm615, %vm618
    %v620 = vsel %vm619, %v614, 0.0
    %v621 = vsel %vm617, %v598, %v620
    %622 = vst [vmem:[%s20] sm:$0xff] %v621
    // Predicated region
    $region66: #{tokenizer_forward.1} parent=1 // pred_check
      _
    $region67: #{tokenizer_forward.1} parent=1 // pred_check_branch
      %624 = sbr.rel (0) target = $region69
    $region68: #{tokenizer_forward.1} parent=1 // pred_region
      %626 = vsyncadd [#allocation3], 0
      %s627 = sshll.u32 [#allocation2], 4
      %s628 = int_to_ptr.vmem [resolvable:$true] %s627
      %s629 = sshll.u32 %s16, 4
      %s630 = int_to_ptr.hbm [resolvable:$true] %s629
      %635 = dma.vmem_to_hbm [thread:$0]  %s628, 256, %s630, [#allocation3], 128, 128, 8
    $region69: #{tokenizer_forward.1} parent=1 // pred_fallthru
      _
    // Predicated region
    $region70: #{tokenizer_forward.1} parent=1 // pred_check
      _
    $region71: #{tokenizer_forward.1} parent=1 // pred_check_branch
      %637 = sbr.rel (0) target = $region73
    $region72: #{tokenizer_forward.1} parent=1 // pred_region
      _
    $region73: #{tokenizer_forward.1} parent=1 // pred_fallthru
      _
    // Predicated region
    $region74: #{tokenizer_forward.1} parent=1 // pred_check
      _
    $region75: #{tokenizer_forward.1} parent=1 // pred_check_branch
      %639 = sbr.rel (0) target = $region77
    $region76: #{tokenizer_forward.1} parent=1 // pred_region
      _
    $region77: #{tokenizer_forward.1} parent=1 // pred_fallthru
      _
    // Predicated region
    $region78: #{tokenizer_forward.1} parent=1 // pred_check
      _
    $region79: #{tokenizer_forward.1} parent=1 // pred_check_branch
      %641 = sbr.rel (0) target = $region81
    $region80: #{tokenizer_forward.1} parent=1 // pred_region
      _
    $region81: #{tokenizer_forward.1} parent=1 // pred_fallthru
      _
    // Predicated region
    $region82: #{tokenizer_forward.1} parent=1 // pred_check
      _
    $region83: #{tokenizer_forward.1} parent=1 // pred_check_branch
      %643 = sbr.rel (0) target = $region85
    $region84: #{tokenizer_forward.1} parent=1 // pred_region
      _
    $region85: #{tokenizer_forward.1} parent=1 // pred_fallthru
      _
    // Predicated region
    $region86: #{tokenizer_forward.1} parent=1 // pred_check
      _
    $region87: #{tokenizer_forward.1} parent=1 // pred_check_branch
      %645 = sbr.rel (0) target = $region89
    $region88: #{tokenizer_forward.1} parent=1 // pred_region
      %647 = dma.done [#allocation3], 256
    $region89: #{tokenizer_forward.1} parent=1 // pred_fallthru
      _
    // Predicated region
    $region90: #{tokenizer_forward.1} parent=1 // pred_check
      _
    $region91: #{tokenizer_forward.1} parent=1 // pred_check_branch
      %649 = sbr.rel (0) target = $region93
    $region92: #{tokenizer_forward.1} parent=1 // pred_region
      _
    $region93: #{tokenizer_forward.1} parent=1 // pred_fallthru
      _
    // Predicated region
    $region94: #{tokenizer_forward.1} parent=1 // pred_check
      _
    $region95: #{tokenizer_forward.1} parent=1 // pred_check_branch
      %651 = sbr.rel (0) target = $region97
    $region96: #{tokenizer_forward.1} parent=1 // pred_region
      _
    $region97: #{tokenizer_forward.1} parent=1 // pred_fallthru
      _
    // Predicated region
    $region98: #{tokenizer_forward.1} parent=1 // pred_check
      _
    $region99: #{tokenizer_forward.1} parent=1 // pred_check_branch
      %653 = sbr.rel (0) target = $region101
    $region100: #{tokenizer_forward.1} parent=1 // pred_region
      _
    $region101: #{tokenizer_forward.1} parent=1 // pred_fallthru
      _
    // Predicated region
    $region102: #{tokenizer_forward.1} parent=1 // pred_check
      _
    $region103: #{tokenizer_forward.1} parent=1 // pred_check_branch
      %655 = sbr.rel (0) target = $region105
    $region104: #{tokenizer_forward.1} parent=1 // pred_region
      _
    $region105: #{tokenizer_forward.1} parent=1 // pred_fallthru
      _
    %656 = vsyncpa [#allocation3], 1

</llo_original>
